<compile_context>
chip_gen: v7x
topology: tpu7x:2x2x1
jax: 0.10.0
libtpu: 0.0.40
codegen_flags: <defaults>
</compile_context>

<pallas_src>
import functools

import jax
import jax.numpy as jnp
from jax.experimental import pallas as pl
from jax.experimental.pallas import tpu as pltpu

_EPS = 1e-5
_MIB = 1024 * 1024
_FUSED_VMEM_BUDGET = 36 * _MIB     # conservative fit test (v7x: 64 MiB/TC total)


# --------------------------------------------------------------------------
# small helpers
# --------------------------------------------------------------------------
def _round_up(x, m):
    return ((x + m - 1) // m) * m


def _cdiv(a, b):
    return (a + b - 1) // b


def _pad_cols(a, cols):
    return jnp.pad(a, ((0, 0), (0, cols - a.shape[1])))


def _pad_rows_cols(a, rows, cols):
    return jnp.pad(a, ((0, rows - a.shape[0]), (0, cols - a.shape[1])))


def _pad_vec(v, n):
    return jnp.pad(v, (0, n - v.shape[0]))


def _tiled_vmem_limit(tile, f_in, f_out, num_tiles, out_bytes):
    est = (2 * tile * f_in * 2                 # bf16 input activation, 2 buffers
           + 2 * tile * f_out * out_bytes      # output activation, 2 buffers
           + 2 * f_in * f_out * 2              # bf16 weight, 2 buffers
           + 4 * num_tiles * 8 * f_in * 4      # stat partial inputs (sublane pad)
           + 4 * 8 * f_out * 4                 # stat partial outputs
           + 8 * (f_in + f_out) * 4            # gamma/beta, bias, scale/shift
           + 2 * _MIB)                         # headroom for compiler scratch
    return int(min(40 * _MIB, max(16 * _MIB, 2 * est)))


def _fused_vmem_estimate(n_pad, f0, e_pad, max_f, weight_bytes):
    return int(2 * n_pad * f0 * 2              # bf16 x0 (double buffered)
               + 2 * n_pad * e_pad * 4         # f32 output
               + 2 * weight_bytes              # weights / biases / gamma-beta
               + 6 * n_pad * max_f * 4         # in-kernel f32 temporaries
               + 2 * _MIB)


# --------------------------------------------------------------------------
# in-kernel math helpers
# --------------------------------------------------------------------------
def _scale_shift(s, q, gb, inv_n):
    """One-pass batch stats (sum, sumsq) + gamma/beta -> folded (scale, shift)."""
    mean = s * inv_n
    var = jnp.maximum(q * inv_n - mean * mean, 0.0)   # biased var (train mode)
    inv = jax.lax.rsqrt(var + _EPS)
    scale = gb[0:1, :] * inv                          # gamma * rsqrt(var+eps)
    shift = gb[1:2, :] - mean * scale                 # beta - mean*scale
    return scale, shift


def _sum_partials(part_ref, num_tiles):
    """Reduce the (num_tiles, 1, F) per-tile partials to (1, F) in-kernel."""
    if num_tiles <= 64:                               # cheap static unroll
        s = part_ref[0]
        for t in range(1, num_tiles):
            s = s + part_ref[t]
        return s
    return jnp.sum(part_ref[...], axis=0)


# --------------------------------------------------------------------------
# fused single-call kernel (whole padded batch resident in VMEM)
# --------------------------------------------------------------------------
def _make_fused_kernel(n, n_pad, num_hidden):
    inv_n = 1.0 / n
    need_mask = n_pad != n

    def kernel(*refs):
        # refs layout: x0 | (w_i, b_i) for hidden 1..H-1 | w_out, b_out |
        #              gb_0..gb_{H-1} | out
        i = 0
        x0_ref = refs[i]; i += 1
        wb = []
        for _ in range(num_hidden - 1):
            wb.append((refs[i], refs[i + 1])); i += 2
        w_out_ref, b_out_ref = refs[i], refs[i + 1]; i += 2
        gb_refs = [refs[i + k] for k in range(num_hidden)]; i += num_hidden
        o_ref = refs[i]

        h = jnp.maximum(x0_ref[...].astype(jnp.float32), 0.0)   # layer-0 pre-BN
        for li in range(num_hidden):
            if need_mask and li > 0:      # layer-0 padded rows are already zero
                row = jax.lax.broadcasted_iota(jnp.int32, h.shape, 0)
                hm = jnp.where(row < n, h, 0.0)
            else:
                hm = h
            s = jnp.sum(hm, axis=0, keepdims=True)
            q = jnp.sum(hm * hm, axis=0, keepdims=True)
            scale, shift = _scale_shift(s, q, gb_refs[li][...], inv_n)
            # match the tiled path's bf16 activation round trip exactly
            xn = h.astype(jnp.bfloat16).astype(jnp.float32) * scale + shift
            xb = xn.astype(jnp.bfloat16)
            if li + 1 < num_hidden:
                w_ref, b_ref = wb[li]
                y = jnp.dot(xb, w_ref[...], preferred_element_type=jnp.float32)
                h = jnp.maximum(y + b_ref[...], 0.0)
            else:
                y = jnp.dot(xb, w_out_ref[...],
                            preferred_element_type=jnp.float32)
                o_ref[...] = jnp.maximum(y + b_out_ref[...], 0.0)

    return kernel


# --------------------------------------------------------------------------
# tiled-path kernels
# --------------------------------------------------------------------------
def _stats0_kernel(x_ref, sum_ref, sq_ref):
    """Layer 0 is stats-only: h0 = relu(x0) (bias already folded into the
    gather table).  Padded rows/cols of x0 are zero, so no masking is needed
    and h0 is never written back to HBM."""
    h = jnp.maximum(x_ref[...].astype(jnp.float32), 0.0)
    sum_ref[0] = jnp.sum(h, axis=0, keepdims=True)
    sq_ref[0] = jnp.sum(h * h, axis=0, keepdims=True)


def _make_hidden_kernel(n, tile, num_tiles):
    """Hidden layer i>=1: in-kernel BN fold of the previous layer's partials,
    relu (needed only when the input is raw x0; a no-op otherwise), bf16 MXU
    matmul with f32 accumulation, bias + ReLU, bf16 activation store, and
    per-tile BN partial stats (tail-row masking only on the last tile)."""
    inv_n = 1.0 / n
    tail_rows = n - (num_tiles - 1) * tile
    has_tail = (n % tile) != 0

    def kernel(x_ref, spart_ref, qpart_ref, gb_ref, w_ref, b_ref,
               h_ref, sum_ref, sq_ref):
        s_in = _sum_partials(spart_ref, num_tiles)
        q_in = _sum_partials(qpart_ref, num_tiles)
        scale, shift = _scale_shift(s_in, q_in, gb_ref[...], inv_n)

        x = jnp.maximum(x_ref[...].astype(jnp.float32), 0.0)
        xn = x * scale + shift
        y = jnp.dot(xn.astype(jnp.bfloat16), w_ref[...],
                    preferred_element_type=jnp.float32)
        h = jnp.maximum(y + b_ref[...], 0.0)
        h_ref[...] = h.astype(jnp.bfloat16)

        # fast unmasked partials on every tile ...
        sum_ref[0] = jnp.sum(h, axis=0, keepdims=True)
        sq_ref[0] = jnp.sum(h * h, axis=0, keepdims=True)
        if has_tail:
            # ... masked recompute only on the last tile
            @pl.when(pl.program_id(0) == num_tiles - 1)
            def _():
                row = jax.lax.broadcasted_iota(jnp.int32, h.shape, 0)
                hm = jnp.where(row < tail_rows, h, 0.0)
                sum_ref[0] = jnp.sum(hm, axis=0, keepdims=True)
                sq_ref[0] = jnp.sum(hm * hm, axis=0, keepdims=True)

    return kernel


def _make_out_kernel(n, num_tiles):
    """Output layer: in-kernel BN fold of the last hidden layer, relu, bf16
    matmul, bias + ReLU (no BatchNorm)."""
    inv_n = 1.0 / n

    def kernel(x_ref, spart_ref, qpart_ref, gb_ref, w_ref, b_ref, o_ref):
        s_in = _sum_partials(spart_ref, num_tiles)
        q_in = _sum_partials(qpart_ref, num_tiles)
        scale, shift = _scale_shift(s_in, q_in, gb_ref[...], inv_n)
        x = jnp.maximum(x_ref[...].astype(jnp.float32), 0.0)
        xn = x * scale + shift
        y = jnp.dot(xn.astype(jnp.bfloat16), w_ref[...],
                    preferred_element_type=jnp.float32)
        o_ref[...] = jnp.maximum(y + b_ref[...], 0.0)

    return kernel


# --------------------------------------------------------------------------
# forward wrapper
# --------------------------------------------------------------------------
def class_embedding_forward(x_pairs, packed, *, num_classes, embedding_size,
                            max_tile=2048, force_tiled=False):
    """x_pairs: (num_pairs, 2) int class indices.  packed: see pack_params."""
    n = x_pairs.shape[0]
    table = packed["embed"]                      # (2C, f0) f32, bias folded in
    gbs = packed["bn"]                           # per hidden layer (2, f) f32
    ws = packed["w"]                             # bf16 weights, layers 1..H-1
    bs = packed["b"]
    w_out, b_out = packed["w_out"], packed["b_out"]
    num_hidden = len(gbs)
    f0 = table.shape[1]
    e_pad = w_out.shape[1]
    feat = [f0] + [w.shape[1] for w in ws] + [e_pad]
    max_f = max(feat)

    # One-hot + first Linear == gather of two embedding rows per pair
    # (bias pre-folded into the first num_classes rows of the table).
    idx = x_pairs.astype(jnp.int32)
    x0 = (jnp.take(table, idx[:, 0], axis=0)
          + jnp.take(table, idx[:, 1] + num_classes, axis=0))
    x0 = x0.astype(jnp.bfloat16)

    # ---------------- fused path: whole batch resident in VMEM --------------
    n_pad = _round_up(max(n, 1), 16)
    weight_bytes = (sum(w.size * 2 + b.size * 4 for w, b in zip(ws, bs))
                    + w_out.size * 2 + b_out.size * 4
                    + sum(g.size * 4 for g in gbs))
    est = _fused_vmem_estimate(n_pad, f0, e_pad, max_f, weight_bytes)
    if (not force_tiled) and est <= _FUSED_VMEM_BUDGET:
        if n_pad != n:
            x0 = jnp.pad(x0, ((0, n_pad - n), (0, 0)))
        inputs = [x0]
        in_specs = [pl.BlockSpec((n_pad, f0), lambda i: (0, 0))]
        for w, b in zip(ws, bs):
            inputs += [w, b]
            in_specs += [pl.BlockSpec(w.shape, lambda i: (0, 0)),
                         pl.BlockSpec(b.shape, lambda i: (0, 0))]
        inputs += [w_out, b_out]
        in_specs += [pl.BlockSpec(w_out.shape, lambda i: (0, 0)),
                     pl.BlockSpec(b_out.shape, lambda i: (0, 0))]
        for gb in gbs:
            inputs.append(gb)
            in_specs.append(pl.BlockSpec(gb.shape, lambda i: (0, 0)))
        out = pl.pallas_call(
            _make_fused_kernel(n, n_pad, num_hidden),
            grid=(1,),
            in_specs=in_specs,
            out_specs=pl.BlockSpec((n_pad, e_pad), lambda i: (0, 0)),
            out_shape=jax.ShapeDtypeStruct((n_pad, e_pad), jnp.float32),
            compiler_params=pltpu.CompilerParams(
                dimension_semantics=("arbitrary",),
                vmem_limit_bytes=int(min(44 * _MIB,
                                         max(16 * _MIB, est + 4 * _MIB))),
            ),
        )(*inputs)
        return out[:n, :embedding_size]

    # ---------------- tiled path: batch-gridded, >= 2 tiles ------------------
    num_splits = max(2, _cdiv(n, max_tile))        # keep both v7x TCs busy
    tile = _round_up(_cdiv(n, num_splits), 16)
    num_tiles = _cdiv(n, tile)
    n_pad = num_tiles * tile
    if n_pad != n:
        x0 = jnp.pad(x0, ((0, n_pad - n), (0, 0)))

    # Layer 0: stats only (no h0 write-back; layer 1 recomputes relu(x0)).
    s_part, q_part = pl.pallas_call(
        _stats0_kernel,
        grid=(num_tiles,),
        in_specs=[pl.BlockSpec((tile, f0), lambda t: (t, 0))],
        out_specs=(pl.BlockSpec((1, 1, f0), lambda t: (t, 0, 0)),
                   pl.BlockSpec((1, 1, f0), lambda t: (t, 0, 0))),
        out_shape=(jax.ShapeDtypeStruct((num_tiles, 1, f0), jnp.float32),
                   jax.ShapeDtypeStruct((num_tiles, 1, f0), jnp.float32)),
        compiler_params=pltpu.CompilerParams(
            dimension_semantics=("parallel",),
            vmem_limit_bytes=_tiled_vmem_limit(tile, f0, f0, num_tiles, 4)),
    )(x0)

    a = x0
    for li in range(1, num_hidden):
        w, b, gb = ws[li - 1], bs[li - 1], gbs[li - 1]
        f_in, f_out = w.shape
        a, s_part, q_part = pl.pallas_call(
            _make_hidden_kernel(n, tile, num_tiles),
            grid=(num_tiles,),
            in_specs=[
                pl.BlockSpec((tile, f_in), lambda t: (t, 0)),
                pl.BlockSpec((num_tiles, 1, f_in), lambda t: (0, 0, 0)),
                pl.BlockSpec((num_tiles, 1, f_in), lambda t: (0, 0, 0)),
                pl.BlockSpec((2, f_in), lambda t: (0, 0)),
                pl.BlockSpec((f_in, f_out), lambda t: (0, 0)),
                pl.BlockSpec((1, f_out), lambda t: (0, 0)),
            ],
            out_specs=(
                pl.BlockSpec((tile, f_out), lambda t: (t, 0)),
                pl.BlockSpec((1, 1, f_out), lambda t: (t, 0, 0)),
                pl.BlockSpec((1, 1, f_out), lambda t: (t, 0, 0)),
            ),
            out_shape=(
                jax.ShapeDtypeStruct((n_pad, f_out), jnp.bfloat16),
                jax.ShapeDtypeStruct((num_tiles, 1, f_out), jnp.float32),
                jax.ShapeDtypeStruct((num_tiles, 1, f_out), jnp.float32),
            ),
            compiler_params=pltpu.CompilerParams(
                dimension_semantics=("parallel",),
                vmem_limit_bytes=_tiled_vmem_limit(tile, f_in, f_out,
                                                   num_tiles, 2)),
        )(a, s_part, q_part, gb, w, b)

    f_in = feat[num_hidden - 1]
    out = pl.pallas_call(
        _make_out_kernel(n, num_tiles),
        grid=(num_tiles,),
        in_specs=[
            pl.BlockSpec((tile, f_in), lambda t: (t, 0)),
            pl.BlockSpec((num_tiles, 1, f_in), lambda t: (0, 0, 0)),
            pl.BlockSpec((num_tiles, 1, f_in), lambda t: (0, 0, 0)),
            pl.BlockSpec((2, f_in), lambda t: (0, 0)),
            pl.BlockSpec((f_in, e_pad), lambda t: (0, 0)),
            pl.BlockSpec((1, e_pad), lambda t: (0, 0)),
        ],
        out_specs=pl.BlockSpec((tile, e_pad), lambda t: (t, 0)),
        out_shape=jax.ShapeDtypeStruct((n_pad, e_pad), jnp.float32),
        compiler_params=pltpu.CompilerParams(
            dimension_semantics=("parallel",),
            vmem_limit_bytes=_tiled_vmem_limit(tile, f_in, e_pad,
                                               num_tiles, 4)),
    )(a, s_part, q_part, gbs[-1], w_out, b_out)

    return out[:n, :embedding_size]


# --------------------------------------------------------------------------
# parameters
# --------------------------------------------------------------------------
def init_params(key, num_classes, hidden_sizes, embedding_size):
    """Logical (unpadded) parameters: W (in,out), b/gamma/beta (out,)."""
    params = {"hidden": [], "out": None}
    dim = 2 * num_classes
    for h in hidden_sizes:
        key, kw, kb, kg, kt = jax.random.split(key, 5)
        w = 0.1 * jax.random.normal(kw, (dim, h), jnp.float32)
        b = 0.05 * jax.random.normal(kb, (h,), jnp.float32)
        g = 1.0 + 0.1 * jax.random.normal(kg, (h,), jnp.float32)
        bt = 0.05 * jax.random.normal(kt, (h,), jnp.float32)
        params["hidden"].append((w, b, g, bt))
        dim = h
    key, kw, kb = jax.random.split(key, 3)
    w = 0.1 * jax.random.normal(kw, (dim, embedding_size), jnp.float32)
    b = 0.05 * jax.random.normal(kb, (embedding_size,), jnp.float32)
    params["out"] = (w, b)
    return params


def pack_params(params, num_classes):
    """Pad feature dims to multiples of 128 lanes, cast matmul weights to
    bf16, and keep the layer-0 weight as an f32 gather table with its bias
    folded into the first `num_classes` rows."""
    hidden = params["hidden"]
    assert len(hidden) >= 1, "ClassEmbedding needs at least one hidden layer"

    w0, b0, _, _ = hidden[0]
    f0 = _round_up(w0.shape[1], 128)
    table = _pad_cols(w0, f0).astype(jnp.float32)
    b0p = _pad_vec(b0, f0).astype(jnp.float32)
    table = table.at[:num_classes, :].add(b0p[None, :])

    packed = {"embed": table, "bn": [], "w": [], "b": []}
    prev = f0
    for i, (w, b, g, bt) in enumerate(hidden):
        fp = _round_up(w.shape[1], 128)
        packed["bn"].append(jnp.stack([_pad_vec(g, fp), _pad_vec(bt, fp)],
                                      axis=0))
        if i > 0:
            packed["w"].append(_pad_rows_cols(w, prev, fp).astype(jnp.bfloat16))
            packed["b"].append(_pad_vec(b, fp).reshape(1, fp))
        prev = fp
    wo, bo = params["out"]
    ep = _round_up(wo.shape[1], 128)
    packed["w_out"] = _pad_rows_cols(wo, prev, ep).astype(jnp.bfloat16)
    packed["b_out"] = _pad_vec(bo, ep).reshape(1, ep)
    return packed


# --------------------------------------------------------------------------
# pure-JAX references (for in-script validation)
# --------------------------------------------------------------------------
def reference_forward(x_pairs, params, num_classes, *, mirror_kernel=False):
    """mirror_kernel=False: faithful f32 PyTorch semantics.
    mirror_kernel=True : mirrors the kernel numerics (row gather + folded
    bias, bf16 activations/matmuls with f32 accumulation, one-pass BN stats)
    -> tight-tolerance plumbing check."""
    hidden = params["hidden"]
    wo, bo = params["out"]
    eps = _EPS
    n = x_pairs.shape[0]

    if not mirror_kernel:
        onehot = jax.nn.one_hot(x_pairs, num_classes, dtype=jnp.float32)
        h = onehot.reshape(n, 2 * num_classes)
        for (w, b, g, bt) in hidden:
            y = jnp.maximum(
                jnp.dot(h, w, precision=jax.lax.Precision.HIGHEST) + b, 0.0)
            mean = jnp.mean(y, axis=0)
            var = jnp.mean((y - mean) ** 2, axis=0)      # biased (train mode)
            h = (y - mean) * jax.lax.rsqrt(var + eps) * g + bt
        return jnp.maximum(
            jnp.dot(h, wo, precision=jax.lax.Precision.HIGHEST) + bo, 0.0)

    inv_n = 1.0 / n
    w0, b0, _, _ = hidden[0]
    idx = x_pairs.astype(jnp.int32)
    x0 = ((jnp.take(w0, idx[:, 0], axis=0) + b0)
          + jnp.take(w0, idx[:, 1] + num_classes, axis=0))
    x0 = x0.astype(jnp.bfloat16)
    h = jnp.maximum(x0.astype(jnp.float32), 0.0)

    def bdot(x, w):
        return jnp.dot(x.astype(jnp.bfloat16), w.astype(jnp.bfloat16),
                       preferred_element_type=jnp.float32)

    for li, (_, _, g, bt) in enumerate(hidden):
        s = jnp.sum(h, axis=0, keepdims=True)
        q = jnp.sum(h * h, axis=0, keepdims=True)
        mean = s * inv_n
        var = jnp.maximum(q * inv_n - mean * mean, 0.0)
        scale = g[None, :] * jax.lax.rsqrt(var + eps)
        shift = bt[None, :] - mean * scale
        xn = h.astype(jnp.bfloat16).astype(jnp.float32) * scale + shift
        if li + 1 < len(hidden):
            wn, bn_, _, _ = hidden[li + 1]
            h = jnp.maximum(bdot(xn, wn) + bn_, 0.0)
        else:
            return jnp.maximum(bdot(xn, wo) + bo, 0.0)


# --------------------------------------------------------------------------
# demo / self-test
# --------------------------------------------------------------------------
if __name__ == "__main__":
    num_classes = 10
    hidden_sizes = [32, 32]
    embedding_size = 16

    root = jax.random.PRNGKey(0)
    kparam, kx1, kx2 = jax.random.split(root, 3)
    params = init_params(kparam, num_classes, hidden_sizes, embedding_size)
    packed = pack_params(params, num_classes)

    def run_and_check(x_pairs, force_tiled):
        fwd = jax.jit(functools.partial(
            class_embedding_forward,
            num_classes=num_classes,
            embedding_size=embedding_size,
            force_tiled=force_tiled))
        out = fwd(x_pairs, packed)
        jax.block_until_ready(out)
        m = x_pairs.shape[0]
        assert out.shape == (m, embedding_size)
        assert out.dtype == jnp.float32
        assert bool(jnp.all(jnp.isfinite(out)))
        assert bool(jnp.all(out >= 0.0))                 # final ReLU
        ref_m = reference_forward(x_pairs, params, num_classes,
                                  mirror_kernel=True)
        diff_m = float(jnp.max(jnp.abs(out - ref_m)))
        assert bool(jnp.allclose(out, ref_m, rtol=1e-2, atol=1e-2)), (
            f"kernel vs bf16-mirrored reference mismatch: {diff_m}")
        ref_f = reference_forward(x_pairs, params, num_classes,
                                  mirror_kernel=False)
        diff_f = float(jnp.max(jnp.abs(out - ref_f)))
        assert bool(jnp.allclose(out, ref_f, rtol=1e-1, atol=1e-1)), (
            f"kernel vs f32 reference mismatch: {diff_f}")
        return out

    # Fused single-kernel path (whole padded batch VMEM-resident); n=10 pads
    # to 16 rows, exercising the in-kernel stats mask.
    x_small = jax.random.randint(kx1, (10, 2), 0, num_classes, dtype=jnp.int32)
    run_and_check(x_small, force_tiled=False)

    # Tiled path: 2 grid tiles (tile=32, n_pad=64), bf16 inter-layer
    # activations, stats-only layer 0, in-kernel BN fold, last-tile masking.
    x_big = jax.random.randint(kx2, (40, 2), 0, num_classes, dtype=jnp.int32)
    run_and_check(x_big, force_tiled=True)

    print("KERNEL_OK")
</pallas_src>

<mosaic_0001>
module attributes {stable_mosaic.version = 11 : i64} {
  func.func @kernel(%arg0: i32, %arg1: memref<16x128xbf16, #tpu.memory_space<vmem>>, %arg2: memref<128x128xbf16, #tpu.memory_space<vmem>>, %arg3: memref<1x128xf32, #tpu.memory_space<vmem>>, %arg4: memref<128x128xbf16, #tpu.memory_space<vmem>>, %arg5: memref<1x128xf32, #tpu.memory_space<vmem>>, %arg6: memref<2x128xf32, #tpu.memory_space<vmem>>, %arg7: memref<2x128xf32, #tpu.memory_space<vmem>>, %arg8: memref<16x128xf32, #tpu.memory_space<vmem>>) attributes {dimension_semantics = [#tpu.dimension_semantics<arbitrary>], iteration_bounds = array<i64: 1>, scalar_prefetch = 0 : i64, scratch_operands = 0 : i64, tpu.core_type = #tpu.core_type<tc>, window_params = [{pipeline_mode = #tpu.pipeline_mode<synchronous>, transform_indices = @transform_0, window_bounds = array<i64: 16, 128>}, {pipeline_mode = #tpu.pipeline_mode<synchronous>, transform_indices = @transform_1, window_bounds = array<i64: 128, 128>}, {pipeline_mode = #tpu.pipeline_mode<synchronous>, transform_indices = @transform_2, window_bounds = array<i64: 1, 128>}, {pipeline_mode = #tpu.pipeline_mode<synchronous>, transform_indices = @transform_3, window_bounds = array<i64: 128, 128>}, {pipeline_mode = #tpu.pipeline_mode<synchronous>, transform_indices = @transform_4, window_bounds = array<i64: 1, 128>}, {pipeline_mode = #tpu.pipeline_mode<synchronous>, transform_indices = @transform_5, window_bounds = array<i64: 2, 128>}, {pipeline_mode = #tpu.pipeline_mode<synchronous>, transform_indices = @transform_6, window_bounds = array<i64: 2, 128>}, {pipeline_mode = #tpu.pipeline_mode<synchronous>, transform_indices = @transform_7, window_bounds = array<i64: 16, 128>}]} {
    %c0 = arith.constant 0 : index
    %c0_0 = arith.constant 0 : index
    %0 = vector.load %arg1[%c0, %c0_0] : memref<16x128xbf16, #tpu.memory_space<vmem>>, vector<16x128xbf16>
    %1 = arith.extf %0 : vector<16x128xbf16> to vector<16x128xf32>
    %cst = arith.constant 0.000000e+00 : f32
    %2 = vector.broadcast %cst : f32 to vector<16x128xf32>
    %3 = arith.maximumf %1, %2 : vector<16x128xf32>
    %cst_1 = arith.constant dense<0.000000e+00> : vector<128xf32>
    %4 = vector.multi_reduction <add>, %3, %cst_1 [0] : vector<16x128xf32> to vector<128xf32>
    %5 = vector.shape_cast %4 : vector<128xf32> to vector<1x128xf32>
    %6 = arith.mulf %3, %3 : vector<16x128xf32>
    %cst_2 = arith.constant dense<0.000000e+00> : vector<128xf32>
    %7 = vector.multi_reduction <add>, %6, %cst_2 [0] : vector<16x128xf32> to vector<128xf32>
    %8 = vector.shape_cast %7 : vector<128xf32> to vector<1x128xf32>
    %c0_3 = arith.constant 0 : index
    %c0_4 = arith.constant 0 : index
    %9 = vector.load %arg6[%c0_3, %c0_4] : memref<2x128xf32, #tpu.memory_space<vmem>>, vector<2x128xf32>
    %cst_5 = arith.constant 1.000000e-01 : f32
    %10 = vector.broadcast %cst_5 : f32 to vector<1x128xf32>
    %11 = arith.mulf %5, %10 : vector<1x128xf32>
    %cst_6 = arith.constant 1.000000e-01 : f32
    %12 = vector.broadcast %cst_6 : f32 to vector<1x128xf32>
    %13 = arith.mulf %8, %12 : vector<1x128xf32>
    %14 = arith.mulf %11, %11 : vector<1x128xf32>
    %15 = arith.subf %13, %14 : vector<1x128xf32>
    %cst_7 = arith.constant 0.000000e+00 : f32
    %16 = vector.broadcast %cst_7 : f32 to vector<1x128xf32>
    %17 = arith.maximumf %15, %16 : vector<1x128xf32>
    %cst_8 = arith.constant 9.99999974E-6 : f32
    %18 = vector.broadcast %cst_8 : f32 to vector<1x128xf32>
    %19 = arith.addf %17, %18 : vector<1x128xf32>
    %20 = math.rsqrt %19 : vector<1x128xf32>
    %21 = vector.extract_strided_slice %9 {offsets = [0, 0], sizes = [1, 128], strides = [1, 1]} : vector<2x128xf32> to vector<1x128xf32>
    %22 = arith.mulf %21, %20 : vector<1x128xf32>
    %23 = vector.extract_strided_slice %9 {offsets = [1, 0], sizes = [1, 128], strides = [1, 1]} : vector<2x128xf32> to vector<1x128xf32>
    %24 = arith.mulf %11, %22 : vector<1x128xf32>
    %25 = arith.subf %23, %24 : vector<1x128xf32>
    %26 = arith.truncf %3 : vector<16x128xf32> to vector<16x128xbf16>
    %27 = arith.extf %26 : vector<16x128xbf16> to vector<16x128xf32>
    %28 = vector.broadcast %22 : vector<1x128xf32> to vector<16x128xf32>
    %29 = arith.mulf %27, %28 : vector<16x128xf32>
    %30 = vector.broadcast %25 : vector<1x128xf32> to vector<16x128xf32>
    %31 = arith.addf %29, %30 : vector<16x128xf32>
    %32 = arith.truncf %31 : vector<16x128xf32> to vector<16x128xbf16>
    %c0_9 = arith.constant 0 : index
    %c0_10 = arith.constant 0 : index
    %33 = vector.load %arg2[%c0_9, %c0_10] : memref<128x128xbf16, #tpu.memory_space<vmem>>, vector<128x128xbf16>
    %cst_11 = arith.constant dense<0.000000e+00> : vector<16x128xf32>
    %34 = tpu.matmul %32, %33, %cst_11 {dimension_numbers = #tpu.dot_dimension_numbers<[1], [0], [0], [1], [0, 0, 1, 1], [], []>} : vector<16x128xbf16>, vector<128x128xbf16>, vector<16x128xf32> -> vector<16x128xf32>
    %c0_12 = arith.constant 0 : index
    %c0_13 = arith.constant 0 : index
    %35 = vector.load %arg3[%c0_12, %c0_13] : memref<1x128xf32, #tpu.memory_space<vmem>>, vector<1x128xf32>
    %36 = vector.broadcast %35 : vector<1x128xf32> to vector<16x128xf32>
    %37 = arith.addf %34, %36 : vector<16x128xf32>
    %cst_14 = arith.constant 0.000000e+00 : f32
    %38 = vector.broadcast %cst_14 : f32 to vector<16x128xf32>
    %39 = arith.maximumf %37, %38 : vector<16x128xf32>
    %40 = tpu.iota {dimensions = array<i32: 0>} : vector<16x128xi32>
    %c10_i32 = arith.constant 10 : i32
    %41 = vector.broadcast %c10_i32 : i32 to vector<16x128xi32>
    %42 = arith.cmpi slt, %40, %41 : vector<16x128xi32>
    %cst_15 = arith.constant 0.000000e+00 : f32
    %43 = vector.broadcast %cst_15 : f32 to vector<16x128xf32>
    %44 = arith.select %42, %39, %43 : vector<16x128xi1>, vector<16x128xf32>
    %cst_16 = arith.constant dense<0.000000e+00> : vector<128xf32>
    %45 = vector.multi_reduction <add>, %44, %cst_16 [0] : vector<16x128xf32> to vector<128xf32>
    %46 = vector.shape_cast %45 : vector<128xf32> to vector<1x128xf32>
    %47 = arith.mulf %44, %44 : vector<16x128xf32>
    %cst_17 = arith.constant dense<0.000000e+00> : vector<128xf32>
    %48 = vector.multi_reduction <add>, %47, %cst_17 [0] : vector<16x128xf32> to vector<128xf32>
    %49 = vector.shape_cast %48 : vector<128xf32> to vector<1x128xf32>
    %c0_18 = arith.constant 0 : index
    %c0_19 = arith.constant 0 : index
    %50 = vector.load %arg7[%c0_18, %c0_19] : memref<2x128xf32, #tpu.memory_space<vmem>>, vector<2x128xf32>
    %cst_20 = arith.constant 1.000000e-01 : f32
    %51 = vector.broadcast %cst_20 : f32 to vector<1x128xf32>
    %52 = arith.mulf %46, %51 : vector<1x128xf32>
    %cst_21 = arith.constant 1.000000e-01 : f32
    %53 = vector.broadcast %cst_21 : f32 to vector<1x128xf32>
    %54 = arith.mulf %49, %53 : vector<1x128xf32>
    %55 = arith.mulf %52, %52 : vector<1x128xf32>
    %56 = arith.subf %54, %55 : vector<1x128xf32>
    %cst_22 = arith.constant 0.000000e+00 : f32
    %57 = vector.broadcast %cst_22 : f32 to vector<1x128xf32>
    %58 = arith.maximumf %56, %57 : vector<1x128xf32>
    %cst_23 = arith.constant 9.99999974E-6 : f32
    %59 = vector.broadcast %cst_23 : f32 to vector<1x128xf32>
    %60 = arith.addf %58, %59 : vector<1x128xf32>
    %61 = math.rsqrt %60 : vector<1x128xf32>
    %62 = vector.extract_strided_slice %50 {offsets = [0, 0], sizes = [1, 128], strides = [1, 1]} : vector<2x128xf32> to vector<1x128xf32>
    %63 = arith.mulf %62, %61 : vector<1x128xf32>
    %64 = vector.extract_strided_slice %50 {offsets = [1, 0], sizes = [1, 128], strides = [1, 1]} : vector<2x128xf32> to vector<1x128xf32>
    %65 = arith.mulf %52, %63 : vector<1x128xf32>
    %66 = arith.subf %64, %65 : vector<1x128xf32>
    %67 = arith.truncf %39 : vector<16x128xf32> to vector<16x128xbf16>
    %68 = arith.extf %67 : vector<16x128xbf16> to vector<16x128xf32>
    %69 = vector.broadcast %63 : vector<1x128xf32> to vector<16x128xf32>
    %70 = arith.mulf %68, %69 : vector<16x128xf32>
    %71 = vector.broadcast %66 : vector<1x128xf32> to vector<16x128xf32>
    %72 = arith.addf %70, %71 : vector<16x128xf32>
    %73 = arith.truncf %72 : vector<16x128xf32> to vector<16x128xbf16>
    %c0_24 = arith.constant 0 : index
    %c0_25 = arith.constant 0 : index
    %74 = vector.load %arg4[%c0_24, %c0_25] : memref<128x128xbf16, #tpu.memory_space<vmem>>, vector<128x128xbf16>
    %cst_26 = arith.constant dense<0.000000e+00> : vector<16x128xf32>
    %75 = tpu.matmul %73, %74, %cst_26 {dimension_numbers = #tpu.dot_dimension_numbers<[1], [0], [0], [1], [0, 0, 1, 1], [], []>} : vector<16x128xbf16>, vector<128x128xbf16>, vector<16x128xf32> -> vector<16x128xf32>
    %c0_27 = arith.constant 0 : index
    %c0_28 = arith.constant 0 : index
    %76 = vector.load %arg5[%c0_27, %c0_28] : memref<1x128xf32, #tpu.memory_space<vmem>>, vector<1x128xf32>
    %77 = vector.broadcast %76 : vector<1x128xf32> to vector<16x128xf32>
    %78 = arith.addf %75, %77 : vector<16x128xf32>
    %cst_29 = arith.constant 0.000000e+00 : f32
    %79 = vector.broadcast %cst_29 : f32 to vector<16x128xf32>
    %80 = arith.maximumf %78, %79 : vector<16x128xf32>
    %c0_30 = arith.constant 0 : index
    %c0_31 = arith.constant 0 : index
    %81 = vector.load %arg8[%c0_30, %c0_31] : memref<16x128xf32, #tpu.memory_space<vmem>>, vector<16x128xf32>
    tpu.vector_store %arg8[%c0_30, %c0_31], %80 {strides = array<i32>} : memref<16x128xf32, #tpu.memory_space<vmem>>, vector<16x128xf32>,
    return
  }
  func.func @transform_0(%arg0: i32) -> (i32, i32) {
    %c0_i32 = arith.constant 0 : i32
    %c0_i32_0 = arith.constant 0 : i32
    %c0_i32_1 = arith.constant 0 : i32
    return %c0_i32, %c0_i32_0 : i32, i32
  }
  func.func @transform_1(%arg0: i32) -> (i32, i32) {
    %c0_i32 = arith.constant 0 : i32
    %c0_i32_0 = arith.constant 0 : i32
    %c0_i32_1 = arith.constant 0 : i32
    return %c0_i32, %c0_i32_0 : i32, i32
  }
  func.func @transform_2(%arg0: i32) -> (i32, i32) {
    %c0_i32 = arith.constant 0 : i32
    %c0_i32_0 = arith.constant 0 : i32
    %c0_i32_1 = arith.constant 0 : i32
    return %c0_i32, %c0_i32_0 : i32, i32
  }
  func.func @transform_3(%arg0: i32) -> (i32, i32) {
    %c0_i32 = arith.constant 0 : i32
    %c0_i32_0 = arith.constant 0 : i32
    %c0_i32_1 = arith.constant 0 : i32
    return %c0_i32, %c0_i32_0 : i32, i32
  }
  func.func @transform_4(%arg0: i32) -> (i32, i32) {
    %c0_i32 = arith.constant 0 : i32
    %c0_i32_0 = arith.constant 0 : i32
    %c0_i32_1 = arith.constant 0 : i32
    return %c0_i32, %c0_i32_0 : i32, i32
  }
  func.func @transform_5(%arg0: i32) -> (i32, i32) {
    %c0_i32 = arith.constant 0 : i32
    %c0_i32_0 = arith.constant 0 : i32
    %c0_i32_1 = arith.constant 0 : i32
    return %c0_i32, %c0_i32_0 : i32, i32
  }
  func.func @transform_6(%arg0: i32) -> (i32, i32) {
    %c0_i32 = arith.constant 0 : i32
    %c0_i32_0 = arith.constant 0 : i32
    %c0_i32_1 = arith.constant 0 : i32
    return %c0_i32, %c0_i32_0 : i32, i32
  }
  func.func @transform_7(%arg0: i32) -> (i32, i32) {
    %c0_i32 = arith.constant 0 : i32
    %c0_i32_0 = arith.constant 0 : i32
    %c0_i32_1 = arith.constant 0 : i32
    return %c0_i32, %c0_i32_0 : i32, i32
  }
}

</mosaic_0001>

<llo_original>
// kernel: class_embedding_forward.1
$region0: #{class_embedding_forward.1}
  #allocation0 [shape = 'u32[]', space=smem, size = 0x4, offset = 0x4, fixed_abs, tag = 'smem constant byte address 0x4 - core index']
  #allocation1 [shape = 'u32[144,128]{1,0:T(1,128)}', space=vmem, size = 0x12000, scoped, tag = 'internal scratch']
  %s0 = inlined_call_operand.vmem [shape: bf16[16,128], index: 0, kind: input, shape index: {}]
  %s1 = inlined_call_operand.vmem [shape: bf16[128,128], index: 1, kind: input, shape index: {}]
  %s2 = inlined_call_operand.vmem [shape: f32[1,128], index: 2, kind: input, shape index: {}]
  %s3 = inlined_call_operand.vmem [shape: bf16[128,128], index: 3, kind: input, shape index: {}]
  %s4 = inlined_call_operand.vmem [shape: f32[1,128], index: 4, kind: input, shape index: {}]
  %s5 = inlined_call_operand.vmem [shape: f32[2,128], index: 5, kind: input, shape index: {}]
  %s6 = inlined_call_operand.vmem [shape: f32[2,128], index: 6, kind: input, shape index: {}]
  %s7 = inlined_call_operand.hbm [shape: f32[16,128], index: 7, kind: output, shape index: {}]
  %s8 = sld [smem:[#allocation0]]
  $region38: #{class_embedding_forward.1} parent=0
    _
  %s10 = ssub.s32 1, %s8
  %s11 = scalar_select 0, %s10, %s8
  $region1: #{class_embedding_forward.1} parent=0
    #allocation2 [shape = 'u8[8192]{0}', space=vmem, size = 0x2000, scoped, tag = 'output window, operand 0, single buffered']
    #allocation3 [shape = 's32[1]{0}', space=sflag, size = 0x4, scoped, tag = 'scoped memory for class_embedding_forward.1']
    %12 = vsyncpa [#allocation3], 0
    // Predicated region
    $region2: #{class_embedding_forward.1} parent=1 // pred_check
      _
    $region3: #{class_embedding_forward.1} parent=1 // pred_check_branch
      %14 = sbr.rel (0) target = $region5
    $region4: #{class_embedding_forward.1} parent=1 // pred_region
      _
    $region5: #{class_embedding_forward.1} parent=1 // pred_fallthru
      _
    // Predicated region
    $region6: #{class_embedding_forward.1} parent=1 // pred_check
      _
    $region7: #{class_embedding_forward.1} parent=1 // pred_check_branch
      %16 = sbr.rel (0) target = $region9
    $region8: #{class_embedding_forward.1} parent=1 // pred_region
      _
    $region9: #{class_embedding_forward.1} parent=1 // pred_fallthru
      _
    // Predicated region
    $region10: #{class_embedding_forward.1} parent=1 // pred_check
      _
    $region11: #{class_embedding_forward.1} parent=1 // pred_check_branch
      %18 = sbr.rel (0) target = $region13
    $region12: #{class_embedding_forward.1} parent=1 // pred_region
      _
    $region13: #{class_embedding_forward.1} parent=1 // pred_fallthru
      _
    // Predicated region
    $region14: #{class_embedding_forward.1} parent=1 // pred_check
      _
    $region15: #{class_embedding_forward.1} parent=1 // pred_check_branch
      %20 = sbr.rel (0) target = $region17
    $region16: #{class_embedding_forward.1} parent=1 // pred_region
      _
    $region17: #{class_embedding_forward.1} parent=1 // pred_fallthru
      _
    // Predicated region
    $region18: #{class_embedding_forward.1} parent=1 // pred_check
      _
    $region19: #{class_embedding_forward.1} parent=1 // pred_check_branch
      %22 = sbr.rel (0) target = $region21
    $region20: #{class_embedding_forward.1} parent=1 // pred_region
      _
    $region21: #{class_embedding_forward.1} parent=1 // pred_fallthru
      _
    // Predicated region
    $region22: #{class_embedding_forward.1} parent=1 // pred_check
      _
    $region23: #{class_embedding_forward.1} parent=1 // pred_check_branch
      %24 = sbr.rel (0) target = $region25
    $region24: #{class_embedding_forward.1} parent=1 // pred_region
      _
    $region25: #{class_embedding_forward.1} parent=1 // pred_fallthru
      _
    // Predicated region
    $region26: #{class_embedding_forward.1} parent=1 // pred_check
      _
    $region27: #{class_embedding_forward.1} parent=1 // pred_check_branch
      %26 = sbr.rel (0) target = $region29
    $region28: #{class_embedding_forward.1} parent=1 // pred_region
      _
    $region29: #{class_embedding_forward.1} parent=1 // pred_fallthru
      _
    %v28 = vld [vmem:[%s0] sm:$0xf]
    %v29 = vld [vmem:[%s0 + $0x4] sm:$0xf]
    %v30 = vunpack.c.l.bf16 %v28
    %v31 = vunpack.c.l.bf16 %v29
    %v32 = vmax.f32 %v30, 0.0
    %v33 = vmax.f32 %v31, 0.0
    %v34 = vadd.f32 %v32, %v33
    %v35 = vrot.slane %v34, 4
    %v36 = vadd.f32 %v34, %v35
    %v37 = vrot.slane %v36, 2
    %v38 = vadd.f32 %v36, %v37
    %v39 = vrot.slane %v38, 1
    %v40 = vadd.f32 %v38, %v39
    %v41 = vmul.f32 %v32, %v32
    %v42 = vmul.f32 %v33, %v33
    %v43 = vadd.f32 %v41, %v42
    %v44 = vrot.slane %v43, 4
    %v45 = vadd.f32 %v43, %v44
    %v46 = vrot.slane %v45, 2
    %v47 = vadd.f32 %v45, %v46
    %v48 = vrot.slane %v47, 1
    %v49 = vadd.f32 %v47, %v48
    %v50 = vld [vmem:[%s5] sm:$0x3]
    %v51 = vmul.f32 %v40, 0.1
    %v52 = vmul.f32 %v49, 0.1
    %v53 = vmul.f32 %v51, %v51
    %v54 = vsub.f32 %v52, %v53
    %v55 = vmax.f32 %v54, 0.0
    %v56 = vadd.f32 %v55, 1e-05
    %v57 = vrsqrt.pop %v56
    %v58 = vmul.f32 %v50, %v57
    %v59 = vmul.f32 %v51, %v58
    %v61 = vrot.slane %v59, 7
    %v63 = vsub.f32 %v50, %v61
    %v64 = vpack.c.bf16 %v33, %v32
    %v65 = vunpack.c.l.bf16 %v64
    %v66 = vunpack.c.h.bf16 %v64
    %v67 = vlaneseq
    %v68 = vshrl.u32 %v67, 7
    %v69 = vsub.s32 0, %v68
    %v70 = vrot.slane %v58, %v69
    %v71 = vmul.f32 %v65, %v70
    %v72 = vmul.f32 %v66, %v70
    %v73 = vlaneseq
    %v74 = vshrl.u32 %v73, 7
    %v75 = vsub.s32 1, %v74
    %v76 = vrot.slane %v63, %v75
    %v77 = vadd.f32 %v71, %v76
    %v78 = vadd.f32 %v72, %v76
    %v79 = vpack.c.bf16 %v78, %v77
    %v80 = vld [vmem:[%s1] sm:$0xf]
    %v81 = vld [vmem:[%s1 + $0x4] sm:$0xf]
    %v82 = vld [vmem:[%s1 + $0x8] sm:$0xf]
    %v83 = vld [vmem:[%s1 + $0xc] sm:$0xf]
    %v84 = vld [vmem:[%s1 + $0x10] sm:$0xf]
    %v85 = vld [vmem:[%s1 + $0x14] sm:$0xf]
    %v86 = vld [vmem:[%s1 + $0x18] sm:$0xf]
    %v87 = vld [vmem:[%s1 + $0x1c] sm:$0xf]
    %v88 = vld [vmem:[%s1 + $0x20] sm:$0xf]
    %v89 = vld [vmem:[%s1 + $0x24] sm:$0xf]
    %v90 = vld [vmem:[%s1 + $0x28] sm:$0xf]
    %v91 = vld [vmem:[%s1 + $0x2c] sm:$0xf]
    %v92 = vld [vmem:[%s1 + $0x30] sm:$0xf]
    %v93 = vld [vmem:[%s1 + $0x34] sm:$0xf]
    %v94 = vld [vmem:[%s1 + $0x38] sm:$0xf]
    %v95 = vld [vmem:[%s1 + $0x3c] sm:$0xf]
    %v96 = vld [vmem:[%s2] sm:$0x1]
    %v98 = vlaneseq
    %v99 = vshrl.u32 %v98, 7
    %v100 = vsub.s32 0, %v99
    %v101 = vrot.slane %v96, %v100
    %v119 = vunpack.c.l.b16 %v80
    %v120 = vunpack.c.l.b16 %v81
    %v121 = vunpack.c.l.b16 %v82
    %v122 = vunpack.c.l.b16 %v83
    %v123 = vunpack.c.l.b16 %v84
    %v124 = vunpack.c.l.b16 %v85
    %v125 = vunpack.c.l.b16 %v86
    %v126 = vunpack.c.l.b16 %v87
    %v127 = vunpack.c.l.b16 %v88
    %v128 = vunpack.c.l.b16 %v89
    %v129 = vunpack.c.l.b16 %v90
    %v130 = vunpack.c.l.b16 %v91
    %v131 = vunpack.c.l.b16 %v92
    %v132 = vunpack.c.l.b16 %v93
    %v133 = vunpack.c.l.b16 %v94
    %v134 = vunpack.c.l.b16 %v95
    %v135 = vpack.c.b16 %v120, %v119
    %v136 = vpack.c.b16 %v122, %v121
    %v137 = vpack.c.b16 %v124, %v123
    %v138 = vpack.c.b16 %v126, %v125
    %v139 = vpack.c.b16 %v128, %v127
    %v140 = vpack.c.b16 %v130, %v129
    %v141 = vpack.c.b16 %v132, %v131
    %v142 = vpack.c.b16 %v134, %v133
    %151 = vmatprep.subr.bf16.mxu0 0
    %152 = vmatpush1.bf16.msra.mxu0 %v135
    %153 = vmatprep.subr.bf16.mxu0 0
    %154 = vmatpush1.bf16.msra.mxu0 %v136
    %155 = vmatprep.subr.bf16.mxu0 0
    %156 = vmatpush1.bf16.msra.mxu0 %v137
    %157 = vmatprep.subr.bf16.mxu0 0
    %158 = vmatpush1.bf16.msra.mxu0 %v138
    %159 = vmatprep.subr.bf16.mxu0 0
    %160 = vmatpush1.bf16.msra.mxu0 %v139
    %161 = vmatprep.subr.bf16.mxu0 0
    %162 = vmatpush1.bf16.msra.mxu0 %v140
    %163 = vmatprep.subr.bf16.mxu0 0
    %164 = vmatpush1.bf16.msra.mxu0 %v141
    %165 = vmatprep.subr.bf16.mxu0 0
    %166 = vmatpush1.bf16.msra.mxu0 %v142
    %167 = vmatprep.subr.bf16.mxu0 0
    %168 = vmatpush1.bf16.msra.mxu0 0
    %169 = vmatprep.subr.bf16.mxu0 0
    %170 = vmatpush1.bf16.msra.mxu0 0
    %171 = vmatprep.subr.bf16.mxu0 0
    %172 = vmatpush1.bf16.msra.mxu0 0
    %173 = vmatprep.subr.bf16.mxu0 0
    %174 = vmatpush1.bf16.msra.mxu0 0
    %175 = vmatprep.subr.bf16.mxu0 0
    %176 = vmatpush1.bf16.msra.mxu0 0
    %177 = vmatprep.subr.bf16.mxu0 0
    %178 = vmatpush1.bf16.msra.mxu0 0
    %179 = vmatprep.subr.bf16.mxu0 0
    %180 = vmatpush1.bf16.msra.mxu0 0
    %181 = vmatprep.subr.bf16.mxu0 0
    %182 = vmatpush1.bf16.msra.mxu0 0
    %183 = vmatprep.mubr.bf16.mxu0 0
    %184 = vmatmul.mubr.bf16.gmra.mrb[0].mxu0 %v79
    %v185 = vpop.f32.mrb[0].mxu0
    %v186 = vadd.f32 %v101, %v185
    %v187 = vpop.f32.mrb[0].mxu0
    %v188 = vpop.f32.mrb[0].mxu0
    %v189 = vadd.f32 %v101, %v188
    %v190 = vpop.f32.mrb[0].mxu0
    %191 = vdwg.mxu0
    %v192 = vmax.f32 %v186, 0.0
    %v193 = vmax.f32 %v189, 0.0
    %v194 = vlaneseq
    %v195 = vshrl.u32 %v194, 7
    %v196 = vadd.s32 %v195, 8
    %vm197 = vcmp.lt.s32.totalorder %v195, 10
    %vm198 = vcmp.lt.s32.totalorder %v196, 10
    %v199 = vsel %vm197, %v192, 0.0
    %v200 = vsel %vm198, %v193, 0.0
    %v201 = vadd.f32 %v199, %v200
    %v202 = vrot.slane %v201, 4
    %v203 = vadd.f32 %v201, %v202
    %v204 = vrot.slane %v203, 2
    %v205 = vadd.f32 %v203, %v204
    %v206 = vrot.slane %v205, 1
    %v207 = vadd.f32 %v205, %v206
    %v208 = vmul.f32 %v199, %v199
    %v209 = vmul.f32 %v200, %v200
    %v210 = vadd.f32 %v208, %v209
    %v211 = vrot.slane %v210, 4
    %v212 = vadd.f32 %v210, %v211
    %v213 = vrot.slane %v212, 2
    %v214 = vadd.f32 %v212, %v213
    %v215 = vrot.slane %v214, 1
    %v216 = vadd.f32 %v214, %v215
    %v217 = vld [vmem:[%s6] sm:$0x3]
    %v218 = vmul.f32 %v207, 0.1
    %v219 = vmul.f32 %v216, 0.1
    %v220 = vmul.f32 %v218, %v218
    %v221 = vsub.f32 %v219, %v220
    %v222 = vmax.f32 %v221, 0.0
    %v223 = vadd.f32 %v222, 1e-05
    %v224 = vrsqrt.pop %v223
    %v225 = vmul.f32 %v217, %v224
    %v226 = vmul.f32 %v218, %v225
    %v228 = vrot.slane %v226, 7
    %v230 = vsub.f32 %v217, %v228
    %v231 = vpack.c.bf16 %v193, %v192
    %v232 = vunpack.c.l.bf16 %v231
    %v233 = vunpack.c.h.bf16 %v231
    %v234 = vlaneseq
    %v235 = vshrl.u32 %v234, 7
    %v236 = vsub.s32 0, %v235
    %v237 = vrot.slane %v225, %v236
    %v238 = vmul.f32 %v232, %v237
    %v239 = vmul.f32 %v233, %v237
    %v240 = vlaneseq
    %v241 = vshrl.u32 %v240, 7
    %v242 = vsub.s32 1, %v241
    %v243 = vrot.slane %v230, %v242
    %v244 = vadd.f32 %v238, %v243
    %v245 = vadd.f32 %v239, %v243
    %v246 = vpack.c.bf16 %v245, %v244
    %v247 = vld [vmem:[%s3] sm:$0xf]
    %v248 = vld [vmem:[%s3 + $0x4] sm:$0xf]
    %v249 = vld [vmem:[%s3 + $0x8] sm:$0xf]
    %v250 = vld [vmem:[%s3 + $0xc] sm:$0xf]
    %v251 = vld [vmem:[%s3 + $0x10] sm:$0xf]
    %v252 = vld [vmem:[%s3 + $0x14] sm:$0xf]
    %v253 = vld [vmem:[%s3 + $0x18] sm:$0xf]
    %v254 = vld [vmem:[%s3 + $0x1c] sm:$0xf]
    %v255 = vld [vmem:[%s3 + $0x20] sm:$0xf]
    %v256 = vld [vmem:[%s3 + $0x24] sm:$0xf]
    %v257 = vld [vmem:[%s3 + $0x28] sm:$0xf]
    %v258 = vld [vmem:[%s3 + $0x2c] sm:$0xf]
    %v259 = vld [vmem:[%s3 + $0x30] sm:$0xf]
    %v260 = vld [vmem:[%s3 + $0x34] sm:$0xf]
    %v261 = vld [vmem:[%s3 + $0x38] sm:$0xf]
    %v262 = vld [vmem:[%s3 + $0x3c] sm:$0xf]
    %v263 = vld [vmem:[%s4] sm:$0x1]
    %v265 = vlaneseq
    %v266 = vshrl.u32 %v265, 7
    %v267 = vsub.s32 0, %v266
    %v268 = vrot.slane %v263, %v267
    %v286 = vunpack.c.l.b16 %v247
    %v287 = vunpack.c.l.b16 %v248
    %v288 = vunpack.c.l.b16 %v249
    %v289 = vunpack.c.l.b16 %v250
    %v290 = vunpack.c.l.b16 %v251
    %v291 = vunpack.c.l.b16 %v252
    %v292 = vunpack.c.l.b16 %v253
    %v293 = vunpack.c.l.b16 %v254
    %v294 = vunpack.c.l.b16 %v255
    %v295 = vunpack.c.l.b16 %v256
    %v296 = vunpack.c.l.b16 %v257
    %v297 = vunpack.c.l.b16 %v258
    %v298 = vunpack.c.l.b16 %v259
    %v299 = vunpack.c.l.b16 %v260
    %v300 = vunpack.c.l.b16 %v261
    %v301 = vunpack.c.l.b16 %v262
    %v302 = vpack.c.b16 %v287, %v286
    %v303 = vpack.c.b16 %v289, %v288
    %v304 = vpack.c.b16 %v291, %v290
    %v305 = vpack.c.b16 %v293, %v292
    %v306 = vpack.c.b16 %v295, %v294
    %v307 = vpack.c.b16 %v297, %v296
    %v308 = vpack.c.b16 %v299, %v298
    %v309 = vpack.c.b16 %v301, %v300
    %318 = vmatprep.subr.bf16.mxu0 0
    %319 = vmatpush1.bf16.msra.mxu0 %v302
    %320 = vmatprep.subr.bf16.mxu0 0
    %321 = vmatpush1.bf16.msra.mxu0 %v303
    %322 = vmatprep.subr.bf16.mxu0 0
    %323 = vmatpush1.bf16.msra.mxu0 %v304
    %324 = vmatprep.subr.bf16.mxu0 0
    %325 = vmatpush1.bf16.msra.mxu0 %v305
    %326 = vmatprep.subr.bf16.mxu0 0
    %327 = vmatpush1.bf16.msra.mxu0 %v306
    %328 = vmatprep.subr.bf16.mxu0 0
    %329 = vmatpush1.bf16.msra.mxu0 %v307
    %330 = vmatprep.subr.bf16.mxu0 0
    %331 = vmatpush1.bf16.msra.mxu0 %v308
    %332 = vmatprep.subr.bf16.mxu0 0
    %333 = vmatpush1.bf16.msra.mxu0 %v309
    %334 = vmatprep.subr.bf16.mxu0 0
    %335 = vmatpush1.bf16.msra.mxu0 0
    %336 = vmatprep.subr.bf16.mxu0 0
    %337 = vmatpush1.bf16.msra.mxu0 0
    %338 = vmatprep.subr.bf16.mxu0 0
    %339 = vmatpush1.bf16.msra.mxu0 0
    %340 = vmatprep.subr.bf16.mxu0 0
    %341 = vmatpush1.bf16.msra.mxu0 0
    %342 = vmatprep.subr.bf16.mxu0 0
    %343 = vmatpush1.bf16.msra.mxu0 0
    %344 = vmatprep.subr.bf16.mxu0 0
    %345 = vmatpush1.bf16.msra.mxu0 0
    %346 = vmatprep.subr.bf16.mxu0 0
    %347 = vmatpush1.bf16.msra.mxu0 0
    %348 = vmatprep.subr.bf16.mxu0 0
    %349 = vmatpush1.bf16.msra.mxu0 0
    %350 = vmatprep.mubr.bf16.mxu0 0
    %351 = vmatmul.mubr.bf16.gmra.mrb[0].mxu0 %v246
    %v352 = vpop.f32.mrb[0].mxu0
    %v353 = vadd.f32 %v268, %v352
    %v354 = vpop.f32.mrb[0].mxu0
    %v355 = vpop.f32.mrb[0].mxu0
    %v356 = vadd.f32 %v268, %v355
    %v357 = vpop.f32.mrb[0].mxu0
    %358 = vdwg.mxu0
    %v359 = vmax.f32 %v353, 0.0
    %v360 = vmax.f32 %v356, 0.0
    %361 = vst [vmem:[#allocation2] sm:$0xff] %v359
    %362 = vst [vmem:[#allocation2 + $0x8] sm:$0xff] %v360
    // Predicated region
    $region30: #{class_embedding_forward.1} parent=1 // pred_check
      _
    $region31: #{class_embedding_forward.1} parent=1 // pred_check_branch
      %364 = sbr.rel (0) target = $region33
    $region32: #{class_embedding_forward.1} parent=1 // pred_region
      %s366 = ssub.s32 256, 256
      %367 = vsyncadd [#allocation3], %s366
      %s368 = sshll.u32 [#allocation2], 4
      %s369 = int_to_ptr.vmem [resolvable:$true] %s368
      %374 = dma.vmem_to_hbm [thread:$0]  %s369, 256, %s7, [#allocation3], 128, 128, 8
    $region33: #{class_embedding_forward.1} parent=1 // pred_fallthru
      _
    // Predicated region
    $region34: #{class_embedding_forward.1} parent=1 // pred_check
      _
    $region35: #{class_embedding_forward.1} parent=1 // pred_check_branch
      %376 = sbr.rel (0) target = $region37
    $region36: #{class_embedding_forward.1} parent=1 // pred_region
      %377 = dma.done [#allocation3], 256
    $region37: #{class_embedding_forward.1} parent=1 // pred_fallthru
      _
    %378 = vsyncpa [#allocation3], 1

</llo_original>
